<compile_context>
chip_gen: v7x
topology: tpu7x:2x2x1
jax: 0.10.0
libtpu: 0.0.40
codegen_flags: <defaults>
</compile_context>

<pallas_src>
import jax
import jax.numpy as jnp
from jax.experimental import pallas as pl
from jax.experimental.pallas import tpu as pltpu


def _conv_matmul_relu_kernel(p_ref, w_ref, b_ref, o_ref):
    # p_ref: (1, 27, tp)  bf16  patch tile   (features x pixels)
    # w_ref: (64, 27)     bf16  weight matrix
    # b_ref: (64, 1)      f32   bias column
    # o_ref: (1, 64, tp)  f32   output tile  (channels x pixels == NCHW slab)
    acc = jnp.dot(w_ref[...], p_ref[0],
                  preferred_element_type=jnp.float32)     # (64, tp) f32 on MXU
    acc = acc + b_ref[...]                                # lane-broadcast bias
    o_ref[0] = jnp.maximum(acc, 0.0)                      # ReLU, f32 store


def _round_up(x, m):
    return ((x + m - 1) // m) * m


def encoder_forward(x, weight, bias, *, tp=2048):
    """Conv2d(3->64, k=3, s=1, p=1) + ReLU.

    x:      (N, 3, H, W)  float32, NCHW (PyTorch convention)
    weight: (64, 3, 3, 3) float32, (O, C, kh, kw) (PyTorch convention)
    bias:   (64,)         float32
    returns (N, 64, H, W) float32
    """
    N, C, H, W = x.shape
    Cout, Cin, KH, KW = weight.shape
    assert Cin == C and KH == 3 and KW == 3

    # --- glue: build transposed patches (features x pixels) straight from NCHW ---
    x_bf = x.astype(jnp.bfloat16)                               # halve HBM reads
    x_pad = jnp.pad(x_bf, ((0, 0), (0, 0), (1, 1), (1, 1)))     # (N, C, H+2, W+2)
    slabs = []
    for kh in range(KH):
        for kw in range(KW):
            slabs.append(x_pad[:, :, kh:kh + H, kw:kw + W])     # (N, C, H, W)
    # feature order (c, kh, kw) matches weight.reshape(Cout, C*KH*KW)
    patches = jnp.stack(slabs, axis=2)                          # (N, C, 9, H, W)
    K = C * KH * KW
    P = H * W
    patches = patches.reshape(N, K, P)                          # (N, 27, P) free reshape

    # Lane-dense pixel tiling: tp multiple of 128, as large as the image allows.
    tp = min(tp, _round_up(P, 128))
    P_pad = _round_up(P, tp)
    if P_pad != P:
        patches = jnp.pad(patches, ((0, 0), (0, 0), (0, P_pad - P)))

    w_mat = weight.reshape(Cout, K).astype(jnp.bfloat16)        # (64, 27)
    b_col = bias.reshape(Cout, 1).astype(jnp.float32)           # (64, 1)

    grid = (N, P_pad // tp)
    out = pl.pallas_call(
        _conv_matmul_relu_kernel,
        out_shape=jax.ShapeDtypeStruct((N, Cout, P_pad), jnp.float32),
        grid_spec=pltpu.PrefetchScalarGridSpec(
            num_scalar_prefetch=0,
            grid=grid,
            in_specs=[
                pl.BlockSpec((1, K, tp), lambda n, p: (n, 0, p)),   # patches
                pl.BlockSpec((Cout, K), lambda n, p: (0, 0)),       # weights
                pl.BlockSpec((Cout, 1), lambda n, p: (0, 0)),       # bias
            ],
            out_specs=pl.BlockSpec((1, Cout, tp), lambda n, p: (n, 0, p)),
        ),
        compiler_params=pltpu.CompilerParams(
            dimension_semantics=("parallel", "parallel"),
            vmem_limit_bytes=32 * 1024 * 1024),
    )(patches, w_mat, b_col)

    if P_pad != P:
        out = out[:, :, :P]
    return out.reshape(N, Cout, H, W)                           # already NCHW


def _reference_forward(x, weight, bias):
    y = jax.lax.conv_general_dilated(
        x, weight, window_strides=(1, 1), padding=((1, 1), (1, 1)),
        dimension_numbers=("NCHW", "OIHW", "NCHW"))
    y = y + bias.reshape(1, -1, 1, 1)
    return jnp.maximum(y, 0.0)


if __name__ == "__main__":
    key = jax.random.PRNGKey(0)
    kx, kw, kb = jax.random.split(key, 3)

    N, C, H, W = 2, 3, 16, 16
    Cout = 64

    x = jax.random.normal(kx, (N, C, H, W), dtype=jnp.float32)
    # Deterministic "kaiming-ish" init for the conv weight and bias.
    fan_in = C * 3 * 3
    weight = jax.random.normal(kw, (Cout, C, 3, 3), dtype=jnp.float32) \
        * (2.0 / fan_in) ** 0.5
    bias = jax.random.normal(kb, (Cout,), dtype=jnp.float32) * 0.01

    out = encoder_forward(x, weight, bias)
    out = jax.block_until_ready(out)
    assert out.shape == (N, Cout, H, W)

    # Loose check vs. the full-f32 reference (bf16 MXU inputs by design).
    ref32 = _reference_forward(x, weight, bias)
    assert jnp.allclose(out, ref32, atol=5e-2, rtol=5e-2)

    # Tight check vs. a reference using the same bf16-rounded operands
    # (isolates kernel correctness from the intentional precision choice).
    x_q = x.astype(jnp.bfloat16).astype(jnp.float32)
    w_q = weight.astype(jnp.bfloat16).astype(jnp.float32)
    ref_bf = _reference_forward(x_q, w_q, bias)
    assert jnp.allclose(out, ref_bf, atol=1e-3, rtol=1e-3)

    print("KERNEL_OK")
</pallas_src>

<mosaic_0001>
module attributes {stable_mosaic.version = 11 : i64} {
  func.func @_conv_matmul_relu_kernel(%arg0: i32, %arg1: i32, %arg2: memref<1x27x256xbf16, #tpu.memory_space<vmem>>, %arg3: memref<64x27xbf16, #tpu.memory_space<vmem>>, %arg4: memref<64x1xf32, #tpu.memory_space<vmem>>, %arg5: memref<1x64x256xf32, #tpu.memory_space<vmem>>) attributes {dimension_semantics = [#tpu.dimension_semantics<parallel>, #tpu.dimension_semantics<parallel>], iteration_bounds = array<i64: 2, 1>, scalar_prefetch = 0 : i64, scratch_operands = 0 : i64, tpu.core_type = #tpu.core_type<tc>, window_params = [{transform_indices = @transform_0, window_bounds = array<i64: 1, 27, 256>}, {pipeline_mode = #tpu.pipeline_mode<synchronous>, transform_indices = @transform_1, window_bounds = array<i64: 64, 27>}, {pipeline_mode = #tpu.pipeline_mode<synchronous>, transform_indices = @transform_2, window_bounds = array<i64: 64, 1>}, {transform_indices = @transform_3, window_bounds = array<i64: 1, 64, 256>}]} {
    %c0 = arith.constant 0 : index
    %c0_0 = arith.constant 0 : index
    %0 = vector.load %arg3[%c0, %c0_0] : memref<64x27xbf16, #tpu.memory_space<vmem>>, vector<64x27xbf16>
    %c0_1 = arith.constant 0 : index
    %c0_2 = arith.constant 0 : index
    %c0_3 = arith.constant 0 : index
    %1 = vector.load %arg2[%c0_1, %c0_2, %c0_3] : memref<1x27x256xbf16, #tpu.memory_space<vmem>>, vector<1x27x256xbf16>
    %2 = vector.shape_cast %1 : vector<1x27x256xbf16> to vector<27x256xbf16>
    %cst = arith.constant dense<0.000000e+00> : vector<64x256xf32>
    %3 = tpu.matmul %0, %2, %cst {dimension_numbers = #tpu.dot_dimension_numbers<[1], [0], [0], [1], [0, 0, 1, 1], [], []>} : vector<64x27xbf16>, vector<27x256xbf16>, vector<64x256xf32> -> vector<64x256xf32>
    %c0_4 = arith.constant 0 : index
    %c0_5 = arith.constant 0 : index
    %4 = vector.load %arg4[%c0_4, %c0_5] : memref<64x1xf32, #tpu.memory_space<vmem>>, vector<64x1xf32>
    %5 = vector.broadcast %4 : vector<64x1xf32> to vector<64x256xf32>
    %6 = arith.addf %3, %5 : vector<64x256xf32>
    %cst_6 = arith.constant 0.000000e+00 : f32
    %7 = vector.broadcast %cst_6 : f32 to vector<64x256xf32>
    %8 = arith.maximumf %6, %7 : vector<64x256xf32>
    %c0_7 = arith.constant 0 : index
    %c0_8 = arith.constant 0 : index
    %c0_9 = arith.constant 0 : index
    %9 = vector.load %arg5[%c0_7, %c0_8, %c0_9] : memref<1x64x256xf32, #tpu.memory_space<vmem>>, vector<1x64x256xf32>
    %10 = vector.shape_cast %9 : vector<1x64x256xf32> to vector<64x256xf32>
    %11 = vector.shape_cast %8 : vector<64x256xf32> to vector<1x64x256xf32>
    tpu.vector_store %arg5[%c0_7, %c0_8, %c0_9], %11 {strides = array<i32>} : memref<1x64x256xf32, #tpu.memory_space<vmem>>, vector<1x64x256xf32>,
    return
  }
  func.func @transform_0(%arg0: i32, %arg1: i32) -> (i32, i32, i32) {
    %c0_i32 = arith.constant 0 : i32
    %c0_i32_0 = arith.constant 0 : i32
    return %arg0, %c0_i32, %arg1 : i32, i32, i32
  }
  func.func @transform_1(%arg0: i32, %arg1: i32) -> (i32, i32) {
    %c0_i32 = arith.constant 0 : i32
    %c0_i32_0 = arith.constant 0 : i32
    %c0_i32_1 = arith.constant 0 : i32
    return %c0_i32, %c0_i32_0 : i32, i32
  }
  func.func @transform_2(%arg0: i32, %arg1: i32) -> (i32, i32) {
    %c0_i32 = arith.constant 0 : i32
    %c0_i32_0 = arith.constant 0 : i32
    %c0_i32_1 = arith.constant 0 : i32
    return %c0_i32, %c0_i32_0 : i32, i32
  }
  func.func @transform_3(%arg0: i32, %arg1: i32) -> (i32, i32, i32) {
    %c0_i32 = arith.constant 0 : i32
    %c0_i32_0 = arith.constant 0 : i32
    return %arg0, %c0_i32, %arg1 : i32, i32, i32
  }
}

</mosaic_0001>

<llo_original>
// kernel: tpu_custom_call.1
$region0: #{tpu_custom_call.1}
  #allocation0 [shape = 'u32[]', space=smem, size = 0x4, offset = 0x4, fixed_abs, tag = 'smem constant byte address 0x4 - core index']
  #allocation1 [shape = 'u32[144,128]{1,0:T(1,128)}', space=vmem, size = 0x12000, scoped, tag = 'internal scratch']
  %s0 = inlined_call_operand.vmem [shape: bf16[2,27,256], index: 0, kind: input, shape index: {}]
  %s1 = inlined_call_operand.vmem [shape: bf16[64,27], index: 1, kind: input, shape index: {}]
  %s2 = inlined_call_operand.vmem [shape: f32[64,1], index: 2, kind: input, shape index: {}]
  %s3 = inlined_call_operand.hbm [shape: f32[2,64,256], index: 3, kind: output, shape index: {}]
  %s4 = sld [smem:[#allocation0]]
  $region45: #{tpu_custom_call.1} parent=0
    _
  %s6 = ssub.s32 1, %s4
  %s7 = scalar_select 0, %s6, %s4
  $region1: #{tpu_custom_call.1} parent=0
    #allocation2 [shape = 'u8[131072]{0}', space=vmem, size = 0x20000, scoped, tag = 'output window, operand 0']
    #allocation3 [shape = 's32[2]{0}', space=sflag, size = 0x8, scoped, tag = 'scoped memory for tpu_custom_call.1']
    %8 = vsyncpa [#allocation3], 0
    %s9 = scalar_lea.sflag [#allocation3], 1
    %10 = vsyncpa %s9, 0
    loop: start=0, step=1, limit=4
    $region2: #{tpu_custom_call.1} parent=1 // loop_pre_header
      _
    $region3: #{tpu_custom_call.1} parent=1 // loop_header
      %s12 = sphi 0, %s16
      %p13 = scmp.ge.s32.totalorder %s12, 4
      %s19 = sphi 0, %s31
      %s20 = sphi 0, %s27
      %s21 = sphi 0, %s19
      %s22 = sphi 0, %s20
      %s23 = sphi 0, %s21
      %s24 = sphi 0, %s22
      %s36 = sphi 0, %s38
      %s39 = sphi 0, %s36
      %s40 = sphi 0, %s39
      %s56 = sphi 0, %s40
      %s60 = sphi 0, %s60
      %s62 = sphi 0, %s60
      %s63 = sphi 0, %s62
      %s77 = sphi 0, %s63
      %s81 = sphi 0, %s81
      %s83 = sphi 0, %s81
      %s84 = sphi 0, %s83
      %s98 = sphi 0, %s84
      %s106 = sphi 0, %s108
      %s109 = sphi 0, %s106
      %s110 = sphi 0, %s109
      %s126 = sphi 0, %s110
    $region4: #{tpu_custom_call.1} parent=1 // loop_header_branch
      %15 = sbr.rel (%p13) target = $region8
    $region5: #{tpu_custom_call.1} parent=1 // loop_body
      %s17 = ssub.s32 %s12, 1
      %s18 = ssub.s32 %s12, 2
      %s25 = sadd.s32 1, %s20
      %p26 = scmp.ge.s32.totalorder %s25, 1
      %s27 = scalar_select %p26, 0, %s25
      %s28 = sadd.s32 1, %s19
      %s29 = scalar_select %p26, %s28, %s19
      %p30 = scmp.ge.s32.totalorder %s29, 2
      %s31 = scalar_select %p30, 0, %s29
      %s32 = ssub.s32 %s19, %s31
      %s33 = ssub.s32 %s20, %s27
      %s34 = sor.u32 %s32, %s33
      %p35 = scmp.eq.s32.totalorder %s34, 0
      %s37 = sadd.s32 %s36, 1
      %s38 = scalar_select %p35, %s36, %s37
      %p41 = pneg %p35
      %p42 = scmp.eq.s32.totalorder %s12, 1
      %p43 = por %p41, %p42
      %p44 = scmp.ne.s32.totalorder %s36, %s39
      %p45 = scmp.eq.s32.totalorder %s12, 0
      %p46 = por %p44, %p45
      %p47 = scmp.ne.s32.totalorder %s36, %s39
      %p48 = scmp.eq.s32.totalorder %s17, 1
      %p49 = por %p47, %p48
      %p50 = scmp.ne.s32.totalorder %s39, %s40
      %p51 = scmp.eq.s32.totalorder %s17, 0
      %p52 = por %p50, %p51
      %p53 = scmp.ne.s32.totalorder %s39, %s40
      %p54 = scmp.eq.s32.totalorder %s18, 1
      %p55 = por %p53, %p54
      %p57 = scmp.ne.s32.totalorder %s40, %s56
      %p58 = scmp.eq.s32.totalorder %s18, 0
      %p59 = por %p57, %p58
      %s61 = sadd.s32 %s60, 1
      %p64 = scmp.eq.s32.totalorder %s12, 1
      %p65 = scmp.ne.s32.totalorder %s60, %s62
      %p66 = scmp.eq.s32.totalorder %s12, 0
      %p67 = por %p65, %p66
      %p68 = scmp.ne.s32.totalorder %s60, %s62
      %p69 = scmp.eq.s32.totalorder %s17, 1
      %p70 = por %p68, %p69
      %p71 = scmp.ne.s32.totalorder %s62, %s63
      %p72 = scmp.eq.s32.totalorder %s17, 0
      %p73 = por %p71, %p72
      %p74 = scmp.ne.s32.totalorder %s62, %s63
      %p75 = scmp.eq.s32.totalorder %s18, 1
      %p76 = por %p74, %p75
      %p78 = scmp.ne.s32.totalorder %s63, %s77
      %p79 = scmp.eq.s32.totalorder %s18, 0
      %p80 = por %p78, %p79
      %s82 = sadd.s32 %s81, 1
      %p85 = scmp.eq.s32.totalorder %s12, 1
      %p86 = scmp.ne.s32.totalorder %s81, %s83
      %p87 = scmp.eq.s32.totalorder %s12, 0
      %p88 = por %p86, %p87
      %p89 = scmp.ne.s32.totalorder %s81, %s83
      %p90 = scmp.eq.s32.totalorder %s17, 1
      %p91 = por %p89, %p90
      %p92 = scmp.ne.s32.totalorder %s83, %s84
      %p93 = scmp.eq.s32.totalorder %s17, 0
      %p94 = por %p92, %p93
      %p95 = scmp.ne.s32.totalorder %s83, %s84
      %p96 = scmp.eq.s32.totalorder %s18, 1
      %p97 = por %p95, %p96
      %p99 = scmp.ne.s32.totalorder %s84, %s98
      %p100 = scmp.eq.s32.totalorder %s18, 0
      %p101 = por %p99, %p100
      %s102 = ssub.s32 %s19, %s31
      %s103 = ssub.s32 %s20, %s27
      %s104 = sor.u32 %s102, %s103
      %p105 = scmp.eq.s32.totalorder %s104, 0
      %s107 = sadd.s32 %s106, 1
      %s108 = scalar_select %p105, %s106, %s107
      %p111 = pneg %p105
      %p112 = scmp.eq.s32.totalorder %s12, 1
      %p113 = por %p111, %p112
      %p114 = scmp.ne.s32.totalorder %s106, %s109
      %p115 = scmp.eq.s32.totalorder %s12, 0
      %p116 = por %p114, %p115
      %p117 = scmp.ne.s32.totalorder %s106, %s109
      %p118 = scmp.eq.s32.totalorder %s17, 1
      %p119 = por %p117, %p118
      %p120 = scmp.ne.s32.totalorder %s109, %s110
      %p121 = scmp.eq.s32.totalorder %s17, 0
      %p122 = por %p120, %p121
      %p123 = scmp.ne.s32.totalorder %s109, %s110
      %p124 = scmp.eq.s32.totalorder %s18, 1
      %p125 = por %p123, %p124
      %p127 = scmp.ne.s32.totalorder %s110, %s126
      %p128 = scmp.eq.s32.totalorder %s18, 0
      %p129 = por %p127, %p128
      %p130 = scmp.le.s32.totalorder 1, %s12
      %p131 = scmp.lt.s32.totalorder %s12, 3
      %p132 = pnand %p130, %p131
      %p133 = pneg %p132
      // Predicated region
      $region9: #{tpu_custom_call.1} parent=5 // pred_check
        _
      $region10: #{tpu_custom_call.1} parent=5 // pred_check_branch
        %135 = sbr.rel (%p132) target = $region12
      $region11: #{tpu_custom_call.1} parent=5 // pred_region
        %s136 = ssub.s32 %s12, 1
        // Predicated region
        $region13: #{tpu_custom_call.1} parent=11 // pred_check
          %p137 = pneg %p73
        $region14: #{tpu_custom_call.1} parent=11 // pred_check_branch
          %139 = sbr.rel (%p137) target = $region16
        $region15: #{tpu_custom_call.1} parent=11 // pred_region
          _
        $region16: #{tpu_custom_call.1} parent=11 // pred_fallthru
          _
        // Predicated region
        $region17: #{tpu_custom_call.1} parent=11 // pred_check
          %p140 = pneg %p94
        $region18: #{tpu_custom_call.1} parent=11 // pred_check_branch
          %142 = sbr.rel (%p140) target = $region20
        $region19: #{tpu_custom_call.1} parent=11 // pred_region
          _
        $region20: #{tpu_custom_call.1} parent=11 // pred_fallthru
          _
      $region12: #{tpu_custom_call.1} parent=5 // pred_fallthru
        _
      %p143 = scmp.lt.s32.totalorder %s12, 2
      // Predicated region
      $region21: #{tpu_custom_call.1} parent=5 // pred_check
        %p144 = pneg %p143
      $region22: #{tpu_custom_call.1} parent=5 // pred_check_branch
        %146 = sbr.rel (%p144) target = $region24
      $region23: #{tpu_custom_call.1} parent=5 // pred_region
        // Predicated region
        $region25: #{tpu_custom_call.1} parent=23 // pred_check
          %p147 = pneg %p46
        $region26: #{tpu_custom_call.1} parent=23 // pred_check_branch
          %149 = sbr.rel (%p147) target = $region28
        $region27: #{tpu_custom_call.1} parent=23 // pred_region
          %s150 = smul.u32 2, %s20
          %p151 = scmp.lt.s32.totalorder %s19, 1
          %s152 = scalar_select %p151, %s19, 1
          %p153 = scmp.lt.s32.totalorder %s150, 1
          %s154 = scalar_select %p153, %s150, 1
          %s155 = smul.addr %s152, 8
          %s156 = sadd.s32 %s154, %s155
          %s157 = smul.addr %s156, 4
          %s158 = scalar_lea.vmem %s0, %s157
          %s159 = smul.u32 2, %s20
        $region28: #{tpu_custom_call.1} parent=23 // pred_fallthru
          _
      $region24: #{tpu_custom_call.1} parent=5 // pred_fallthru
        _
      %p160 = scmp.le.s32.totalorder 1, %s12
      %p161 = scmp.lt.s32.totalorder %s12, 3
      %p162 = pnand %p160, %p161
      %p163 = pneg %p162
      // Predicated region
      $region29: #{tpu_custom_call.1} parent=5 // pred_check
        _
      $region30: #{tpu_custom_call.1} parent=5 // pred_check_branch
        %165 = sbr.rel (%p162) target = $region32
      $region31: #{tpu_custom_call.1} parent=5 // pred_region
        %s166 = ssub.s32 %s12, 1
        %s167 = smul.u32 2, %s22
        %p168 = scmp.lt.s32.totalorder %s21, 1
        %s169 = scalar_select %p168, %s21, 1
        %p170 = scmp.lt.s32.totalorder %s167, 1
        %s171 = scalar_select %p170, %s167, 1
        %s172 = smul.addr %s169, 8
        %s173 = sadd.s32 %s171, %s172
        %s174 = smul.addr %s173, 4
        %s175 = scalar_lea.vmem %s0, %s174
        %p176 = pneg %p52
        %p177 = pneg %p49
        %p178 = pneg %p73
        %p179 = pneg %p70
        %p180 = pneg %p94
        %p181 = pneg %p91
        %p182 = pneg %p122
        %p183 = pneg %p119
        %s184 = sand.u32 %s109, 1
        %s185 = scalar_lea.sflag [#allocation3], %s184
        %s186 = sand.u32 %s109, 1
        %s187 = smul.addr %s186, 128
        %s188 = scalar_lea.vmem [#allocation2], %s187
        %s189 = smul.u32 2, %s22
        %p190 = scmp.lt.s32.totalorder %s21, 1
        %s191 = scalar_select %p190, %s21, 1
        %p192 = scmp.lt.s32.totalorder %s189, 1
        %s193 = scalar_select %p192, %s189, 1
        %s194 = smul.addr %s191, 8
        %s195 = sadd.s32 %s193, %s194
        %s196 = smul.addr %s195, 4
        %s197 = scalar_lea.vmem %s0, %s196
        %s198 = smul.u32 2, %s22
        %s199 = smul.u32 2, %s22
        %v201 = vld [vmem:[%s1] sm:$0xf]
        %v202 = vld [vmem:[%s1 + $0x4] sm:$0xf]
        %v203 = vld [vmem:[%s1 + $0x8] sm:$0xf]
        %v204 = vld [vmem:[%s1 + $0xc] sm:$0xf]
        %v205 = vld [vmem:[%s1 + $0x10] sm:$0xf]
        %v206 = vld [vmem:[%s1 + $0x14] sm:$0xf]
        %v207 = vld [vmem:[%s1 + $0x18] sm:$0xf]
        %v208 = vld [vmem:[%s1 + $0x1c] sm:$0xf]
        %v209 = vld [vmem:[%s197] sm:$0xff]
        %v210 = vld [vmem:[%s197 + $0x8] sm:$0xff]
        %v211 = vld [vmem:[%s197 + $0x10] sm:$0xff]
        %v212 = vld [vmem:[%s197 + $0x18] sm:$0x33]
        %v213 = vld [vmem:[%s2] sm:$0xff]
        %v214 = vld [vmem:[%s2 + $0x8] sm:$0xff]
        %v215 = vld [vmem:[%s2 + $0x10] sm:$0xff]
        %v216 = vld [vmem:[%s2 + $0x18] sm:$0xff]
        %v217 = vld [vmem:[%s2 + $0x20] sm:$0xff]
        %v218 = vld [vmem:[%s2 + $0x28] sm:$0xff]
        %v219 = vld [vmem:[%s2 + $0x30] sm:$0xff]
        %v220 = vld [vmem:[%s2 + $0x38] sm:$0xff]
        %222 = vset.pattern.permute.xlu0 0
        %223 = vperm.xlu0 %222, %v213
        %v224 = vpop.permute.xlu0 %223
        %227 = vset.pattern.permute.xlu0 0
        %228 = vperm.xlu0 %227, %v214
        %v229 = vpop.permute.xlu0 %228
        %232 = vset.pattern.permute.xlu0 0
        %233 = vperm.xlu0 %232, %v215
        %v234 = vpop.permute.xlu0 %233
        %237 = vset.pattern.permute.xlu0 0
        %238 = vperm.xlu0 %237, %v216
        %v239 = vpop.permute.xlu0 %238
        %242 = vset.pattern.permute.xlu0 0
        %243 = vperm.xlu0 %242, %v217
        %v244 = vpop.permute.xlu0 %243
        %247 = vset.pattern.permute.xlu0 0
        %248 = vperm.xlu0 %247, %v218
        %v249 = vpop.permute.xlu0 %248
        %252 = vset.pattern.permute.xlu0 0
        %253 = vperm.xlu0 %252, %v219
        %v254 = vpop.permute.xlu0 %253
        %257 = vset.pattern.permute.xlu0 0
        %258 = vperm.xlu0 %257, %v220
        %v259 = vpop.permute.xlu0 %258
        %v269 = vunpack.c.l.b16 %v201
        %v270 = vunpack.c.l.b16 %v202
        %v271 = vunpack.c.l.b16 %v203
        %v272 = vunpack.c.l.b16 %v204
        %v273 = vunpack.c.l.b16 %v205
        %v274 = vunpack.c.l.b16 %v206
        %v275 = vunpack.c.l.b16 %v207
        %v276 = vunpack.c.l.b16 %v208
        %v277 = vpack.c.b16 %v270, %v269
        %v278 = vpack.c.b16 %v272, %v271
        %v279 = vpack.c.b16 %v274, %v273
        %v280 = vpack.c.b16 %v276, %v275
        %v285 = vunpack.c.l.b16 %v209
        %v286 = vunpack.c.h.b16 %v209
        %v287 = vunpack.c.l.b16 %v210
        %v288 = vunpack.c.h.b16 %v210
        %v289 = vunpack.c.l.b16 %v211
        %v290 = vunpack.c.h.b16 %v211
        %v291 = vunpack.c.l.b16 %v212
        %v292 = vunpack.c.h.b16 %v212
        %v293 = vpack.c.b16 %v287, %v285
        %v294 = vpack.c.b16 %v288, %v286
        %v295 = vpack.c.b16 %v291, %v289
        %v296 = vpack.c.b16 %v292, %v290
        %vm299 = vcmask 220160
        %v301 = vsel %vm299, %v277, 0
        %v304 = vsel %vm299, %v278, 0
        %v307 = vsel %vm299, %v279, 0
        %v310 = vsel %vm299, %v280, 0
        %vm312 = vcmask 1044480
        %vm313 = vcmask 1045504
        %v314 = vsel %vm312, 4294967295, 65535
        %v315 = vsel %vm313, %v314, 0
        %v317 = vand.u32 %v295, %v315
        %v320 = vand.u32 %v296, %v315
        %322 = vmatprep.subr.bf16.mxu0 %v294
        %323 = vmatpush1.bf16.msra.mxu0 %v293
        %324 = vmatprep.subr.bf16.mxu0 %v320
        %325 = vmatpush1.bf16.msra.mxu0 %v317
        %326 = vmatprep.subr.bf16.mxu0 0
        %327 = vmatpush1.bf16.msra.mxu0 0
        %328 = vmatprep.subr.bf16.mxu0 0
        %329 = vmatpush1.bf16.msra.mxu0 0
        %330 = vmatprep.subr.bf16.mxu0 0
        %331 = vmatpush1.bf16.msra.mxu0 0
        %332 = vmatprep.subr.bf16.mxu0 0
        %333 = vmatpush1.bf16.msra.mxu0 0
        %334 = vmatprep.subr.bf16.mxu0 0
        %335 = vmatpush1.bf16.msra.mxu0 0
        %336 = vmatprep.subr.bf16.mxu0 0
        %337 = vmatpush1.bf16.msra.mxu0 0
        %338 = vmatprep.subr.bf16.mxu0 0
        %339 = vmatpush1.bf16.msra.mxu0 0
        %340 = vmatprep.subr.bf16.mxu0 0
        %341 = vmatpush1.bf16.msra.mxu0 0
        %342 = vmatprep.subr.bf16.mxu0 0
        %343 = vmatpush1.bf16.msra.mxu0 0
        %344 = vmatprep.subr.bf16.mxu0 0
        %345 = vmatpush1.bf16.msra.mxu0 0
        %346 = vmatprep.subr.bf16.mxu0 0
        %347 = vmatpush1.bf16.msra.mxu0 0
        %348 = vmatprep.subr.bf16.mxu0 0
        %349 = vmatpush1.bf16.msra.mxu0 0
        %350 = vmatprep.subr.bf16.mxu0 0
        %351 = vmatpush1.bf16.msra.mxu0 0
        %352 = vmatprep.subr.bf16.mxu0 0
        %353 = vmatpush1.bf16.msra.mxu0 0
        %354 = vmatprep.mubr.bf16.mxu0 0
        %355 = vmatmul.mubr.bf16.gmra.mrb[0].mxu0 %v301
        %v356 = vpop.f32.mrb[0].mxu0
        %v357 = vadd.f32 %v224, %v356
        %v358 = vpop.f32.mrb[0].mxu0
        %v359 = vadd.f32 %v224, %v358
        %v360 = vpop.f32.mrb[0].mxu0
        %v361 = vadd.f32 %v229, %v360
        %v362 = vpop.f32.mrb[0].mxu0
        %v363 = vadd.f32 %v229, %v362
        %364 = vmatprep.mubr.bf16.mxu0 0
        %365 = vmatmul.mubr.bf16.gmra.mrb[0].mxu0 %v304
        %v366 = vpop.f32.mrb[0].mxu0
        %v367 = vadd.f32 %v234, %v366
        %v368 = vpop.f32.mrb[0].mxu0
        %v369 = vadd.f32 %v234, %v368
        %v370 = vpop.f32.mrb[0].mxu0
        %v371 = vadd.f32 %v239, %v370
        %v372 = vpop.f32.mrb[0].mxu0
        %v373 = vadd.f32 %v239, %v372
        %374 = vmatprep.mubr.bf16.mxu0 0
        %375 = vmatmul.mubr.bf16.gmra.mrb[0].mxu0 %v307
        %v376 = vpop.f32.mrb[0].mxu0
        %v377 = vadd.f32 %v244, %v376
        %v378 = vpop.f32.mrb[0].mxu0
        %v379 = vadd.f32 %v244, %v378
        %v380 = vpop.f32.mrb[0].mxu0
        %v381 = vadd.f32 %v249, %v380
        %v382 = vpop.f32.mrb[0].mxu0
        %v383 = vadd.f32 %v249, %v382
        %384 = vmatprep.mubr.bf16.mxu0 0
        %385 = vmatmul.mubr.bf16.gmra.mrb[0].mxu0 %v310
        %v386 = vpop.f32.mrb[0].mxu0
        %v387 = vadd.f32 %v254, %v386
        %v388 = vpop.f32.mrb[0].mxu0
        %v389 = vadd.f32 %v254, %v388
        %v390 = vpop.f32.mrb[0].mxu0
        %v391 = vadd.f32 %v259, %v390
        %v392 = vpop.f32.mrb[0].mxu0
        %v393 = vadd.f32 %v259, %v392
        %394 = vdwg.mxu0
        %v395 = vmax.f32 %v357, 0.0
        %v396 = vmax.f32 %v359, 0.0
        %v397 = vmax.f32 %v361, 0.0
        %v398 = vmax.f32 %v363, 0.0
        %v399 = vmax.f32 %v367, 0.0
        %v400 = vmax.f32 %v369, 0.0
        %v401 = vmax.f32 %v371, 0.0
        %v402 = vmax.f32 %v373, 0.0
        %v403 = vmax.f32 %v377, 0.0
        %v404 = vmax.f32 %v379, 0.0
        %v405 = vmax.f32 %v381, 0.0
        %v406 = vmax.f32 %v383, 0.0
        %v407 = vmax.f32 %v387, 0.0
        %v408 = vmax.f32 %v389, 0.0
        %v409 = vmax.f32 %v391, 0.0
        %v410 = vmax.f32 %v393, 0.0
        %411 = vst [vmem:[%s188] sm:$0xff] %v395
        %412 = vst [vmem:[%s188 + $0x8] sm:$0xff] %v396
        %413 = vst [vmem:[%s188 + $0x10] sm:$0xff] %v397
        %414 = vst [vmem:[%s188 + $0x18] sm:$0xff] %v398
        %415 = vst [vmem:[%s188 + $0x20] sm:$0xff] %v399
        %416 = vst [vmem:[%s188 + $0x28] sm:$0xff] %v400
        %417 = vst [vmem:[%s188 + $0x30] sm:$0xff] %v401
        %418 = vst [vmem:[%s188 + $0x38] sm:$0xff] %v402
        %419 = vst [vmem:[%s188 + $0x40] sm:$0xff] %v403
        %420 = vst [vmem:[%s188 + $0x48] sm:$0xff] %v404
        %421 = vst [vmem:[%s188 + $0x50] sm:$0xff] %v405
        %422 = vst [vmem:[%s188 + $0x58] sm:$0xff] %v406
        %423 = vst [vmem:[%s188 + $0x60] sm:$0xff] %v407
        %424 = vst [vmem:[%s188 + $0x68] sm:$0xff] %v408
        %425 = vst [vmem:[%s188 + $0x70] sm:$0xff] %v409
        %426 = vst [vmem:[%s188 + $0x78] sm:$0xff] %v410
        %s427 = sand.u32 %s109, 1
        %s428 = scalar_lea.sflag [#allocation3], %s427
        %s429 = sand.u32 %s109, 1
        %s430 = smul.addr %s429, 128
        %s431 = scalar_lea.vmem [#allocation2], %s430
        // Predicated region
        $region33: #{tpu_custom_call.1} parent=31 // pred_check
          %p432 = pneg %p119
        $region34: #{tpu_custom_call.1} parent=31 // pred_check_branch
          %434 = sbr.rel (%p432) target = $region36
        $region35: #{tpu_custom_call.1} parent=31 // pred_region
          %s435 = smul.u32 2, %s22
          %s437 = ssub.s32 2048, 2048
          %438 = vsyncadd %s428, %s437
          %s439 = smul.addr %s21, 16
          %s440 = sadd.s32 %s435, %s439
          %s441 = smul.addr %s440, 128
          %s442 = scalar_lea.hbm %s3, %s441
          %s443 = sshll.u32 %s431, 4
          %s444 = int_to_ptr.vmem [resolvable:$true] %s443
          %449 = dma.vmem_to_hbm [thread:$0]  %s444, 2048, %s442, %s428, 256, 256, 16
        $region36: #{tpu_custom_call.1} parent=31 // pred_fallthru
          _
      $region32: #{tpu_custom_call.1} parent=5 // pred_fallthru
        _
      %p450 = scmp.le.s32.totalorder 2, %s12
      // Predicated region
      $region37: #{tpu_custom_call.1} parent=5 // pred_check
        %p451 = pneg %p450
      $region38: #{tpu_custom_call.1} parent=5 // pred_check_branch
        %453 = sbr.rel (%p451) target = $region40
      $region39: #{tpu_custom_call.1} parent=5 // pred_region
        %s454 = ssub.s32 %s12, 2
        // Predicated region
        $region41: #{tpu_custom_call.1} parent=39 // pred_check
          %p455 = pneg %p125
        $region42: #{tpu_custom_call.1} parent=39 // pred_check_branch
          %457 = sbr.rel (%p455) target = $region44
        $region43: #{tpu_custom_call.1} parent=39 // pred_region
          %s458 = sand.u32 %s110, 1
          %s459 = scalar_lea.sflag [#allocation3], %s458
          %s460 = sand.u32 %s110, 1
          %s461 = smul.addr %s460, 128
          %s462 = scalar_lea.vmem [#allocation2], %s461
          %463 = dma.done %s459, 2048
        $region44: #{tpu_custom_call.1} parent=39 // pred_fallthru
          _
      $region40: #{tpu_custom_call.1} parent=5 // pred_fallthru
        _
    $region6: #{tpu_custom_call.1} parent=1 // loop_footer
      %s16 = sadd.s32 1, %s12
    $region7: #{tpu_custom_call.1} parent=1 // loop_footer_branch
      %11 = sbr.rel target = $region3
    $region8: #{tpu_custom_call.1} parent=1 // loop_exit
      _
    %464 = vsyncpa [#allocation3], 1
    %s465 = scalar_lea.sflag [#allocation3], 1
    %466 = vsyncpa %s465, 1

</llo_original>
